<compile_context>
chip_gen: v5e
topology: v5e:2x2
jax: 0.10.0
libtpu: 0.0.40
codegen_flags: <defaults>
</compile_context>

<pallas_src>
import jax
import jax.numpy as jnp
from jax.experimental import pallas as pl
from jax.experimental.pallas import tpu as pltpu

EPS = 1e-5


def _make_kernel(true_hw, eps):
    """Build the per-tile kernel with the true spatial size baked in."""
    inv_hw = 1.0 / float(true_hw)

    def kernel(x_ref, wb_ref, o_ref):
        # x_ref / o_ref : (ROWS_BLK, HW_PAD) tile, one (b, c) instance per row.
        # wb_ref        : (ROWS_BLK, 2) f32; col 0 = scale, col 1 = shift
        #                 (already gathered by label in the wrapper).
        x = x_ref[...].astype(jnp.float32)                       # single load, widened once

        # Single-pass per-row stats (zero pads in the lane dim drop out because
        # we divide by the TRUE HW, not the padded one).
        s1 = jnp.sum(x, axis=-1, keepdims=True) * inv_hw          # mean      (ROWS, 1)
        s2 = jnp.sum(x * x, axis=-1, keepdims=True) * inv_hw      # E[x^2]    (ROWS, 1)
        var = jnp.maximum(s2 - s1 * s1, 0.0)                      # biased var (F.batch_norm train)
        inv = jax.lax.rsqrt(var + eps)                            # EUP

        scale = wb_ref[:, 0:1]                                    # (ROWS, 1)
        shift = wb_ref[:, 1:2]                                    # (ROWS, 1)

        # Fold everything into one broadcast FMA on the narrow column:
        #   out = (x - mean) * inv * scale + shift = x*a + b
        a = inv * scale
        b = shift - s1 * a
        o_ref[...] = (x * a + b).astype(o_ref.dtype)

    return kernel


def _choose_rows_block(rows, hw_pad, itemsize):
    # Honest VMEM accounting: per grid step the live footprint is roughly
    #   2x input double-buffer + 2x output double-buffer (x dtype)
    #   + ~1x f32 widened working copy + the (lane-padded) wb buffer.
    # Targeting ~2 MiB for the x tile keeps the total around 10-12 MiB,
    # comfortable on v7x's 64 MiB-per-TC VMEM (mem-bound tiles >= ~1 MiB are
    # already near the HBM roofline, so bigger buys nothing).
    target_bytes = 2 * 1024 * 1024
    bytes_per_row = max(hw_pad * max(int(itemsize), 1), 1)
    rb = max(8, (target_bytes // bytes_per_row) // 8 * 8)

    # Keep at least ~4 grid steps (when rows permit) so double-buffered
    # pipelining works and the "parallel" axis can shard across v7x's 2 TCs.
    rb_steps = max(8, ((rows + 3) // 4 + 7) // 8 * 8)
    rb = min(rb, rb_steps)

    # Never exceed the (rounded-up) number of rows.
    rb = min(rb, max(8, (rows + 7) // 8 * 8))
    return int(rb)


def cond_instance_norm(x, label, weight, bias, eps=EPS):
    """x: (B, C, H, W); label: (B,) int; weight/bias: (num_labels, C)."""
    B, C, H, W = x.shape
    HW = H * W
    rows = B * C

    # Embedding lookup (F.embedding) in plain JAX glue; pack scale/shift into a
    # single (rows, 2) f32 array -> one DMA / one VMEM buffer in the kernel.
    w_col = weight[label].reshape(rows, 1).astype(jnp.float32)
    b_col = bias[label].reshape(rows, 1).astype(jnp.float32)
    wb = jnp.concatenate([w_col, b_col], axis=1)                  # (rows, 2)

    x2 = x.reshape(rows, HW)

    # Lane-density guard: keep the trailing dim a multiple of 128 so stores are
    # unmasked full vregs.  Zero pads drop out of the stats (divide by true HW).
    hw_pad = ((HW + 127) // 128) * 128
    if hw_pad != HW:
        x2 = jnp.pad(x2, ((0, 0), (0, hw_pad - HW)))

    rows_blk = _choose_rows_block(rows, hw_pad, jnp.dtype(x.dtype).itemsize)
    grid = (pl.cdiv(rows, rows_blk),)  # ragged boundary block handled by Pallas

    out = pl.pallas_call(
        _make_kernel(HW, eps),
        out_shape=jax.ShapeDtypeStruct((rows, hw_pad), x.dtype),
        grid_spec=pltpu.PrefetchScalarGridSpec(
            num_scalar_prefetch=0,
            grid=grid,
            in_specs=[
                pl.BlockSpec((rows_blk, hw_pad), lambda i: (i, 0)),  # x rows
                pl.BlockSpec((rows_blk, 2), lambda i: (i, 0)),       # packed scale/shift
            ],
            out_specs=pl.BlockSpec((rows_blk, hw_pad), lambda i: (i, 0)),
        ),
        compiler_params=pltpu.CompilerParams(
            # Single fused row axis, fully independent across blocks.
            # TODO(synk): verify in a trace that "parallel" shards this axis
            # across both v7x TensorCores; if not, switch to CORE_PARALLEL.
            dimension_semantics=("parallel",),
            vmem_limit_bytes=32 * 1024 * 1024,
        ),
    )(x2, wb)

    if hw_pad != HW:
        out = out[:, :HW]
    return out.reshape(B, C, H, W)


def _reference(x, label, weight, bias):
    # Pure-JAX reference reproducing F.batch_norm(training=True) per-instance semantics.
    xf = x.astype(jnp.float32)
    mean = jnp.mean(xf, axis=(2, 3), keepdims=True)
    var = jnp.mean((xf - mean) ** 2, axis=(2, 3), keepdims=True)
    w = weight[label][:, :, None, None]
    b = bias[label][:, :, None, None]
    return ((xf - mean) * jax.lax.rsqrt(var + EPS) * w + b).astype(x.dtype)


if __name__ == "__main__":
    key = jax.random.PRNGKey(0)
    k_x, k_w, k_l = jax.random.split(key, 3)

    B, C, H, W = 2, 4, 16, 16
    num_labels = 3

    x = jax.random.normal(k_x, (B, C, H, W), dtype=jnp.float32)
    label = jax.random.randint(k_l, (B,), 0, num_labels)

    # Parameters: weight ~ U[0,1) (uniform_()), bias = zeros (reset_parameters()).
    weight = jax.random.uniform(k_w, (num_labels, C), dtype=jnp.float32)
    bias = jnp.zeros((num_labels, C), dtype=jnp.float32)

    out = cond_instance_norm(x, label, weight, bias)
    out = jax.block_until_ready(out)

    ref = _reference(x, label, weight, bias)
    assert out.shape == (B, C, H, W)
    assert jnp.max(jnp.abs(out - ref)) < 1e-4

    # TODO(synk): running_mean/running_var buffer updates (training-time side
    # effects) are not modeled; they do not affect the forward output here.
    print("KERNEL_OK")
</pallas_src>

<mosaic_0001>
module attributes {stable_mosaic.version = 11 : i64} {
  func.func @kernel(%arg0: i32, %arg1: memref<8x256xf32, #tpu.memory_space<vmem>>, %arg2: memref<8x2xf32, #tpu.memory_space<vmem>>, %arg3: memref<8x256xf32, #tpu.memory_space<vmem>>) attributes {dimension_semantics = [#tpu.dimension_semantics<parallel>], iteration_bounds = array<i64: 1>, scalar_prefetch = 0 : i64, scratch_operands = 0 : i64, tpu.core_type = #tpu.core_type<tc>, window_params = [{transform_indices = @transform_0, window_bounds = array<i64: 8, 256>}, {transform_indices = @transform_1, window_bounds = array<i64: 8, 2>}, {transform_indices = @transform_2, window_bounds = array<i64: 8, 256>}]} {
    %c0 = arith.constant 0 : index
    %c0_0 = arith.constant 0 : index
    %0 = vector.load %arg1[%c0, %c0_0] : memref<8x256xf32, #tpu.memory_space<vmem>>, vector<8x256xf32>
    %cst = arith.constant dense<0.000000e+00> : vector<8xf32>
    %1 = vector.multi_reduction <add>, %0, %cst [1] : vector<8x256xf32> to vector<8xf32>
    %2 = vector.shape_cast %1 : vector<8xf32> to vector<8x1xf32>
    %cst_1 = arith.constant 3.906250e-03 : f32
    %3 = vector.broadcast %cst_1 : f32 to vector<8x1xf32>
    %4 = arith.mulf %2, %3 : vector<8x1xf32>
    %5 = arith.mulf %0, %0 : vector<8x256xf32>
    %cst_2 = arith.constant dense<0.000000e+00> : vector<8xf32>
    %6 = vector.multi_reduction <add>, %5, %cst_2 [1] : vector<8x256xf32> to vector<8xf32>
    %7 = vector.shape_cast %6 : vector<8xf32> to vector<8x1xf32>
    %cst_3 = arith.constant 3.906250e-03 : f32
    %8 = vector.broadcast %cst_3 : f32 to vector<8x1xf32>
    %9 = arith.mulf %7, %8 : vector<8x1xf32>
    %10 = arith.mulf %4, %4 : vector<8x1xf32>
    %11 = arith.subf %9, %10 : vector<8x1xf32>
    %cst_4 = arith.constant 0.000000e+00 : f32
    %12 = vector.broadcast %cst_4 : f32 to vector<8x1xf32>
    %13 = arith.maximumf %11, %12 : vector<8x1xf32>
    %cst_5 = arith.constant 9.99999974E-6 : f32
    %14 = vector.broadcast %cst_5 : f32 to vector<8x1xf32>
    %15 = arith.addf %13, %14 : vector<8x1xf32>
    %16 = math.rsqrt %15 : vector<8x1xf32>
    %c0_6 = arith.constant 0 : index
    %c0_7 = arith.constant 0 : index
    %17 = vector.load %arg2[%c0_6, %c0_7] : memref<8x2xf32, #tpu.memory_space<vmem>>, vector<8x1xf32>
    %c0_8 = arith.constant 0 : index
    %c1 = arith.constant 1 : index
    %18 = vector.load %arg2[%c0_8, %c1] : memref<8x2xf32, #tpu.memory_space<vmem>>, vector<8x1xf32>
    %19 = arith.mulf %16, %17 : vector<8x1xf32>
    %20 = arith.mulf %4, %19 : vector<8x1xf32>
    %21 = arith.subf %18, %20 : vector<8x1xf32>
    %22 = vector.broadcast %19 : vector<8x1xf32> to vector<8x256xf32>
    %23 = arith.mulf %0, %22 : vector<8x256xf32>
    %24 = vector.broadcast %21 : vector<8x1xf32> to vector<8x256xf32>
    %25 = arith.addf %23, %24 : vector<8x256xf32>
    %c0_9 = arith.constant 0 : index
    %c0_10 = arith.constant 0 : index
    %26 = vector.load %arg3[%c0_9, %c0_10] : memref<8x256xf32, #tpu.memory_space<vmem>>, vector<8x256xf32>
    tpu.vector_store %arg3[%c0_9, %c0_10], %25 {strides = array<i32>} : memref<8x256xf32, #tpu.memory_space<vmem>>, vector<8x256xf32>,
    return
  }
  func.func @transform_0(%arg0: i32) -> (i32, i32) {
    %c0_i32 = arith.constant 0 : i32
    %c0_i32_0 = arith.constant 0 : i32
    return %arg0, %c0_i32 : i32, i32
  }
  func.func @transform_1(%arg0: i32) -> (i32, i32) {
    %c0_i32 = arith.constant 0 : i32
    %c0_i32_0 = arith.constant 0 : i32
    return %arg0, %c0_i32 : i32, i32
  }
  func.func @transform_2(%arg0: i32) -> (i32, i32) {
    %c0_i32 = arith.constant 0 : i32
    %c0_i32_0 = arith.constant 0 : i32
    return %arg0, %c0_i32 : i32, i32
  }
}

</mosaic_0001>

<llo_original>
// kernel: tpu_custom_call.1
$region0: #{tpu_custom_call.1}
  #allocation0 [shape = 'u32[]', space=smem, size = 0x4, offset = 0x4, fixed_abs, tag = 'smem constant byte address 0x4 - core index']
  #allocation1 [shape = 'u32[72,128]{1,0:T(1,128)}', space=vmem, size = 0x9000, scoped, tag = 'internal scratch']
  %s0 = inlined_call_operand.hbm [shape: f32[8,256], index: 0, kind: input, shape index: {}]
  %s1 = inlined_call_operand.vmem [shape: f32[8,2], index: 1, kind: input, shape index: {}]
  %s2 = inlined_call_operand.hbm [shape: f32[8,256], index: 2, kind: output, shape index: {}]
  %s3 = sld [smem:[#allocation0]]
  $region22: #{tpu_custom_call.1} parent=0
    _
  %s5 = ssub.s32 1, %s3
  %s6 = scalar_select 0, %s5, %s3
  $region1: #{tpu_custom_call.1} parent=0
    #allocation2 [shape = 'u8[8192]{0}', space=vmem, size = 0x2000, scoped, tag = 'input window, operand 0, single buffered']
    #allocation3 [shape = 's32[1]{0}', space=sflag, size = 0x4, scoped, tag = 'scoped memory for tpu_custom_call.1']
    #allocation4 [shape = 's32[1]{0}', space=sflag, size = 0x4, scoped, tag = 'scoped memory for tpu_custom_call.1']
    #allocation5 [shape = 'u8[8192]{0}', space=vmem, size = 0x2000, scoped, tag = 'output window, operand 0, single buffered']
    %7 = vsyncpa [#allocation3], 0
    %8 = vsyncpa [#allocation4], 0
    // Predicated region
    $region2: #{tpu_custom_call.1} parent=1 // pred_check
      _
    $region3: #{tpu_custom_call.1} parent=1 // pred_check_branch
      %10 = sbr.rel (0) target = $region5
    $region4: #{tpu_custom_call.1} parent=1 // pred_region
      %12 = vsyncadd [#allocation3], 0
      %s14 = sshll.u32 %s0, 4
      %s15 = int_to_ptr.hbm [resolvable:$true] %s14
      %s16 = sshll.u32 [#allocation2], 4
      %s17 = int_to_ptr.vmem [resolvable:$true] %s16
      %19 = dma.hbm_to_vmem [thread:$0]  %s15, 256, %s17, [#allocation3]
    $region5: #{tpu_custom_call.1} parent=1 // pred_fallthru
      _
    // Predicated region
    $region6: #{tpu_custom_call.1} parent=1 // pred_check
      _
    $region7: #{tpu_custom_call.1} parent=1 // pred_check_branch
      %21 = sbr.rel (0) target = $region9
    $region8: #{tpu_custom_call.1} parent=1 // pred_region
      _
    $region9: #{tpu_custom_call.1} parent=1 // pred_fallthru
      _
    // Predicated region
    $region10: #{tpu_custom_call.1} parent=1 // pred_check
      _
    $region11: #{tpu_custom_call.1} parent=1 // pred_check_branch
      %23 = sbr.rel (0) target = $region13
    $region12: #{tpu_custom_call.1} parent=1 // pred_region
      %25 = dma.done [#allocation3], 256
    $region13: #{tpu_custom_call.1} parent=1 // pred_fallthru
      _
    %v26 = vld [vmem:[#allocation2] sm:$0xff]
    %v27 = vld [vmem:[#allocation2 + $0x8] sm:$0xff]
    %v28 = vadd.f32 %v26, %v27
    %29 = vadd.xlane.f32.xlu0 %v28
    %v30 = vpop.xlane.xlu0 %29
    %v31 = vmul.f32 %v30, 0.00390625
    %v32 = vmul.f32 %v26, %v26
    %v33 = vmul.f32 %v27, %v27
    %v34 = vadd.f32 %v32, %v33
    %35 = vadd.xlane.f32.xlu0 %v34
    %v36 = vpop.xlane.xlu0 %35
    %v37 = vmul.f32 %v36, 0.00390625
    %v38 = vmul.f32 %v31, %v31
    %v39 = vsub.f32 %v37, %v38
    %v40 = vmax.f32 %v39, 0.0
    %v41 = vadd.f32 %v40, 1e-05
    %v42 = vrsqrt.pop %v41
    %v43 = vmul.f32 %v42, %v41
    %v44 = vmul.f32 %v43, %v42
    %v45 = vmul.f32 0.5, %v44
    %v46 = vsub.f32 1.5, %v45
    %v47 = vmul.f32 %v42, %v46
    %vm48 = vweird.f32 %v41
    %vm49 = vweird.f32 %v42
    %vm50 = vmor %vm48, %vm49
    %v51 = vsel %vm50, %v42, %v47
    %v52 = vld [vmem:[%s1] sm:$0xff]
    %v53 = vmul.f32 %v51, %v52
    %v54 = vmul.f32 %v31, %v53
    %56 = vrot.lane.b32.xlu0 %v54, 1
    %v57 = vpop.permute.xlu0 %56
    %v59 = vsub.f32 %v52, %v57
    %61 = vset.pattern.permute.xlu0 0
    %62 = vperm.xlu0 %61, %v53
    %v63 = vpop.permute.xlu0 %62
    %v65 = vmul.f32 %v26, %v63
    %v66 = vmul.f32 %v27, %v63
    %68 = vset.pattern.permute.xlu0 1
    %69 = vperm.xlu0 %68, %v59
    %v70 = vpop.permute.xlu0 %69
    %v72 = vadd.f32 %v65, %v70
    %v73 = vadd.f32 %v66, %v70
    %74 = vst [vmem:[#allocation5] sm:$0xff] %v72
    %75 = vst [vmem:[#allocation5 + $0x8] sm:$0xff] %v73
    // Predicated region
    $region14: #{tpu_custom_call.1} parent=1 // pred_check
      _
    $region15: #{tpu_custom_call.1} parent=1 // pred_check_branch
      %77 = sbr.rel (0) target = $region17
    $region16: #{tpu_custom_call.1} parent=1 // pred_region
      %79 = vsyncadd [#allocation4], 0
      %s81 = sshll.u32 [#allocation5], 4
      %s82 = int_to_ptr.vmem [resolvable:$true] %s81
      %s83 = sshll.u32 %s2, 4
      %s84 = int_to_ptr.hbm [resolvable:$true] %s83
      %86 = dma.vmem_to_hbm [thread:$0]  %s82, 256, %s84, [#allocation4]
    $region17: #{tpu_custom_call.1} parent=1 // pred_fallthru
      _
    // Predicated region
    $region18: #{tpu_custom_call.1} parent=1 // pred_check
      _
    $region19: #{tpu_custom_call.1} parent=1 // pred_check_branch
      %88 = sbr.rel (0) target = $region21
    $region20: #{tpu_custom_call.1} parent=1 // pred_region
      %90 = dma.done [#allocation4], 256
    $region21: #{tpu_custom_call.1} parent=1 // pred_fallthru
      _
    %91 = vsyncpa [#allocation3], 1
    %92 = vsyncpa [#allocation4], 1

</llo_original>
